<compile_context>
chip_gen: v7x
topology: tpu7x:2x2x1
jax: 0.10.0
libtpu: 0.0.40
codegen_flags: <defaults>
</compile_context>

<pallas_src>
import jax
import jax.numpy as jnp
from jax import lax
from jax.experimental import pallas as pl
from jax.experimental.pallas import tpu as pltpu

# ---- model hyper-parameters (small, consistent with the module) -------------
N_CLASS = 32      # vocabulary size
EMB     = 16      # emb_size
HIDDEN  = 32      # n_hidden
SEQ     = 8       # sequence length
BATCH   = 4       # batch size

# Batch rows handled per grid block.  8 = one sublane (enough for the example);
# for real throughput raise this toward the MXU height (128-256) and/or feed a
# larger batch — the kernel and specs below scale without change.
B_BLK   = 8
OUT_PAD = 128     # pad class dim to one full lane group (lane-dense output)


def lstm_kernel(xg_ref, wh_ref, wp_ref, bp_ref, out_ref):
    """Whole LSTM recurrence for one batch block, in one kernel invocation.

    xg_ref : (SEQ, B_BLK, 4*HIDDEN)  precomputed per-token gate inputs
                                     Cx[token] = C[token] @ Wx + [b_i|b_f|b_g|b_o]
    wh_ref : (HIDDEN, 4*HIDDEN)      [W_hi | W_hf | W_hg | W_ho]^T concatenated
    wp_ref : (HIDDEN, OUT_PAD)       final projection W^T (zero-padded to 128 lanes)
    bp_ref : (1, OUT_PAD)            final bias b        (zero-padded to 128 lanes)
    out_ref: (B_BLK, OUT_PAD)
    """
    H = HIDDEN
    B = B_BLK

    # Hoist the recurrent weight load; the MXU re-uses the same (32,128) RHS tile
    # for all 8 serial steps.
    wh = wh_ref[...]

    # Built once: lanes [2H, 3H) are the g-gate (plain tanh), all other lanes are
    # sigmoid gates.  sigmoid(x) = 0.5*tanh(0.5*x) + 0.5, so with
    #   scale = 1.0 on g lanes, 0.5 elsewhere        shift = 1 - scale
    # the whole gate activation is ONE tanh per step: act = tanh(g*scale)*scale+shift.
    lane = lax.broadcasted_iota(jnp.int32, (B, 4 * H), 1)
    g_lanes = (lane >= 2 * H) & (lane < 3 * H)
    scale = jnp.where(g_lanes, 1.0, 0.5).astype(jnp.float32)
    shift = 1.0 - scale

    h = jnp.zeros((B, H), jnp.float32)
    c = jnp.zeros((B, H), jnp.float32)

    # SEQ is a compile-time constant: static unroll; only h @ Wh and the gate
    # elementwise math sit on the serial dependency chain.
    for t in range(SEQ):
        gates = xg_ref[t] + jnp.dot(h, wh, preferred_element_type=jnp.float32)
        act = jnp.tanh(gates * scale) * scale + shift        # (B, 4H), one EUP tanh
        # TODO(synk): the four 32-lane extracts below land on the XLU; a full-width
        # roll-based update (or a bundle-dump check that XLU is not the bound slot)
        # could shave the serial chain further.
        i_t = act[:, 0 * H:1 * H]
        f_t = act[:, 1 * H:2 * H]
        g_t = act[:, 2 * H:3 * H]
        o_t = act[:, 3 * H:4 * H]
        c = f_t * c + i_t * g_t
        h = o_t * jnp.tanh(c)

    # Final projection: lane-dense (B, 128) store, unmasked.
    out_ref[...] = (jnp.dot(h, wp_ref[...], preferred_element_type=jnp.float32)
                    + bp_ref[...]).astype(out_ref.dtype)


def prepare_params(params):
    """One-time prep: fold embedding + input projection + gate biases into a single
    (N_CLASS, 4H) table and lane-pad the output head.  Keeps these XLA ops out of
    the per-call forward."""
    cx = params["C"] @ params["Wx"] + params["bg"]                    # (32, 128)
    wp = jnp.pad(params["Wp"], ((0, 0), (0, OUT_PAD - N_CLASS)))      # (32, 128)
    bp = jnp.pad(params["bp"], ((0, 0), (0, OUT_PAD - N_CLASS)))      # (1, 128)
    return {"Cx": cx, "Wh": params["Wh"], "Wp": wp, "bp": bp}


def text_lstm_forward(X, kparams):
    """X: int32 [batch, SEQ] token ids. kparams: output of prepare_params.
    Returns float32 [batch, N_CLASS]."""
    batch = X.shape[0]
    b_pad = -(-batch // B_BLK) * B_BLK          # pad batch up to a block multiple
    n_blk = b_pad // B_BLK

    # Pad the tiny int id matrix (not float activations); padded rows use token 0,
    # compute harmless values, and are sliced off below.
    X_pad = jnp.pad(X, ((0, b_pad - batch), (0, 0)))

    # Single gather: per-token gate inputs (input projection + biases prefused).
    xg = kparams["Cx"][X_pad.T]                 # (SEQ, b_pad, 4H), time-major

    out = pl.pallas_call(
        lstm_kernel,
        out_shape=jax.ShapeDtypeStruct((b_pad, OUT_PAD), jnp.float32),
        grid=(n_blk,),
        in_specs=[
            pl.BlockSpec((SEQ, B_BLK, 4 * HIDDEN), lambda i: (0, i, 0)),
            pl.BlockSpec((HIDDEN, 4 * HIDDEN), lambda i: (0, 0)),
            pl.BlockSpec((HIDDEN, OUT_PAD), lambda i: (0, 0)),
            pl.BlockSpec((1, OUT_PAD), lambda i: (0, 0)),
        ],
        out_specs=pl.BlockSpec((B_BLK, OUT_PAD), lambda i: (i, 0)),
        compiler_params=pltpu.CompilerParams(
            dimension_semantics=("parallel",)),
    )(xg, kparams["Wh"], kparams["Wp"], kparams["bp"])

    return out[:batch, :N_CLASS]


def make_params(key):
    """Deterministic parameter init matching the module's shapes.
    PyTorch Linear(in, out, bias=False) weight has shape [out, in]; we store the
    transposed [in, out] matrices the kernel consumes. Biases are ones, as in
    the module's __init__."""
    keys = jax.random.split(key, 10)
    sc = 0.1

    C = sc * jax.random.normal(keys[0], (N_CLASS, EMB), jnp.float32)

    def lin(k, n_in, n_out):      # returns W^T with W: [n_out, n_in]
        return sc * jax.random.normal(k, (n_in, n_out), jnp.float32)

    W_ii = lin(keys[1], EMB, HIDDEN); W_hi = lin(keys[2], HIDDEN, HIDDEN)
    W_if = lin(keys[3], EMB, HIDDEN); W_hf = lin(keys[4], HIDDEN, HIDDEN)
    W_ig = lin(keys[5], EMB, HIDDEN); W_hg = lin(keys[6], HIDDEN, HIDDEN)
    W_io = lin(keys[7], EMB, HIDDEN); W_ho = lin(keys[8], HIDDEN, HIDDEN)
    Wp   = lin(keys[9], HIDDEN, N_CLASS)

    Wx = jnp.concatenate([W_ii, W_if, W_ig, W_io], axis=1)   # (EMB, 4H)
    Wh = jnp.concatenate([W_hi, W_hf, W_hg, W_ho], axis=1)   # (H, 4H)
    bg = jnp.ones((1, 4 * HIDDEN), jnp.float32)              # b_i,b_f,b_g,b_o = ones
    bp = jnp.ones((1, N_CLASS), jnp.float32)                 # b = ones

    return {"C": C, "Wx": Wx, "Wh": Wh, "bg": bg, "Wp": Wp, "bp": bp}


def reference_forward(X, params):
    """Pure-JAX replica of the PyTorch forward, for a correctness check."""
    emb = params["C"][X]
    emb = jnp.transpose(emb, (1, 0, 2))                      # (SEQ, BATCH, EMB)
    H = HIDDEN
    h = jnp.zeros((X.shape[0], H), jnp.float32)
    c = jnp.zeros((X.shape[0], H), jnp.float32)
    for t in range(emb.shape[0]):
        x = emb[t]
        g = x @ params["Wx"] + h @ params["Wh"] + params["bg"]
        i_t = jax.nn.sigmoid(g[:, 0 * H:1 * H])
        f_t = jax.nn.sigmoid(g[:, 1 * H:2 * H])
        g_t = jnp.tanh(g[:, 2 * H:3 * H])
        o_t = jax.nn.sigmoid(g[:, 3 * H:4 * H])
        c = f_t * c + i_t * g_t
        h = o_t * jnp.tanh(c)
    return h @ params["Wp"] + params["bp"]


if __name__ == "__main__":
    key = jax.random.PRNGKey(0)
    k_param, k_tok = jax.random.split(key)

    params = make_params(k_param)
    kparams = prepare_params(params)      # one-time: fused Cx table + padded head
    X = jax.random.randint(k_tok, (BATCH, SEQ), 0, N_CLASS, dtype=jnp.int32)

    fwd = jax.jit(text_lstm_forward)
    out = jax.block_until_ready(fwd(X, kparams))
    ref = jax.block_until_ready(reference_forward(X, params))

    assert out.shape == (BATCH, N_CLASS)
    # Tolerance is slightly relaxed vs strict 1e-5 because the kernel computes the
    # sigmoid gates via the identity sigmoid(x)=0.5*tanh(0.5x)+0.5 (single EUP tanh);
    # the hardware tanh/sigmoid approximations differ at the ~1e-7 level per op.
    assert jnp.allclose(out, ref, atol=1e-4, rtol=1e-4), "mismatch vs JAX reference"
    print("KERNEL_OK")
</pallas_src>

<mosaic_0001>
module attributes {stable_mosaic.version = 11 : i64} {
  func.func @lstm_kernel(%arg0: i32, %arg1: memref<8x8x128xf32, #tpu.memory_space<vmem>>, %arg2: memref<32x128xf32, #tpu.memory_space<vmem>>, %arg3: memref<32x128xf32, #tpu.memory_space<vmem>>, %arg4: memref<1x128xf32, #tpu.memory_space<vmem>>, %arg5: memref<8x128xf32, #tpu.memory_space<vmem>>) attributes {dimension_semantics = [#tpu.dimension_semantics<parallel>], iteration_bounds = array<i64: 1>, scalar_prefetch = 0 : i64, scratch_operands = 0 : i64, tpu.core_type = #tpu.core_type<tc>, window_params = [{transform_indices = @transform_0, window_bounds = array<i64: 8, 8, 128>}, {pipeline_mode = #tpu.pipeline_mode<synchronous>, transform_indices = @transform_1, window_bounds = array<i64: 32, 128>}, {pipeline_mode = #tpu.pipeline_mode<synchronous>, transform_indices = @transform_2, window_bounds = array<i64: 32, 128>}, {pipeline_mode = #tpu.pipeline_mode<synchronous>, transform_indices = @transform_3, window_bounds = array<i64: 1, 128>}, {transform_indices = @transform_4, window_bounds = array<i64: 8, 128>}]} {
    %c0 = arith.constant 0 : index
    %c0_0 = arith.constant 0 : index
    %0 = vector.load %arg2[%c0, %c0_0] : memref<32x128xf32, #tpu.memory_space<vmem>>, vector<32x128xf32>
    %1 = tpu.iota {dimensions = array<i32: 1>} : vector<8x128xi32>
    %c64_i32 = arith.constant 64 : i32
    %2 = vector.broadcast %c64_i32 : i32 to vector<8x128xi32>
    %3 = arith.cmpi sge, %1, %2 : vector<8x128xi32>
    %c96_i32 = arith.constant 96 : i32
    %4 = vector.broadcast %c96_i32 : i32 to vector<8x128xi32>
    %5 = arith.cmpi slt, %1, %4 : vector<8x128xi32>
    %6 = arith.andi %3, %5 : vector<8x128xi1>
    %cst = arith.constant 1.000000e+00 : f32
    %cst_1 = arith.constant 5.000000e-01 : f32
    %7 = vector.broadcast %cst : f32 to vector<8x128xf32>
    %8 = vector.broadcast %cst_1 : f32 to vector<8x128xf32>
    %9 = arith.select %6, %7, %8 : vector<8x128xi1>, vector<8x128xf32>
    %cst_2 = arith.constant 1.000000e+00 : f32
    %10 = vector.broadcast %cst_2 : f32 to vector<8x128xf32>
    %11 = arith.subf %10, %9 : vector<8x128xf32>
    %cst_3 = arith.constant 0.000000e+00 : f32
    %12 = vector.broadcast %cst_3 : f32 to vector<8x32xf32>
    %cst_4 = arith.constant 0.000000e+00 : f32
    %13 = vector.broadcast %cst_4 : f32 to vector<8x32xf32>
    %c0_5 = arith.constant 0 : index
    %c0_6 = arith.constant 0 : index
    %c0_7 = arith.constant 0 : index
    %14 = vector.load %arg1[%c0_5, %c0_6, %c0_7] : memref<8x8x128xf32, #tpu.memory_space<vmem>>, vector<1x8x128xf32>
    %15 = vector.shape_cast %14 : vector<1x8x128xf32> to vector<8x128xf32>
    %cst_8 = arith.constant dense<0.000000e+00> : vector<8x128xf32>
    %16 = tpu.matmul %12, %0, %cst_8 {dimension_numbers = #tpu.dot_dimension_numbers<[1], [0], [0], [1], [0, 0, 1, 1], [], []>} : vector<8x32xf32>, vector<32x128xf32>, vector<8x128xf32> -> vector<8x128xf32>
    %17 = arith.addf %15, %16 : vector<8x128xf32>
    %18 = arith.mulf %17, %9 : vector<8x128xf32>
    %19 = math.tanh %18 : vector<8x128xf32>
    %20 = arith.mulf %19, %9 : vector<8x128xf32>
    %21 = arith.addf %20, %11 : vector<8x128xf32>
    %22 = vector.extract_strided_slice %21 {offsets = [0, 0], sizes = [8, 32], strides = [1, 1]} : vector<8x128xf32> to vector<8x32xf32>
    %23 = vector.extract_strided_slice %21 {offsets = [0, 32], sizes = [8, 32], strides = [1, 1]} : vector<8x128xf32> to vector<8x32xf32>
    %24 = vector.extract_strided_slice %21 {offsets = [0, 64], sizes = [8, 32], strides = [1, 1]} : vector<8x128xf32> to vector<8x32xf32>
    %25 = vector.extract_strided_slice %21 {offsets = [0, 96], sizes = [8, 32], strides = [1, 1]} : vector<8x128xf32> to vector<8x32xf32>
    %26 = arith.mulf %23, %13 : vector<8x32xf32>
    %27 = arith.mulf %22, %24 : vector<8x32xf32>
    %28 = arith.addf %26, %27 : vector<8x32xf32>
    %29 = math.tanh %28 : vector<8x32xf32>
    %30 = arith.mulf %25, %29 : vector<8x32xf32>
    %c1 = arith.constant 1 : index
    %c0_9 = arith.constant 0 : index
    %c0_10 = arith.constant 0 : index
    %31 = vector.load %arg1[%c1, %c0_9, %c0_10] : memref<8x8x128xf32, #tpu.memory_space<vmem>>, vector<1x8x128xf32>
    %32 = vector.shape_cast %31 : vector<1x8x128xf32> to vector<8x128xf32>
    %cst_11 = arith.constant dense<0.000000e+00> : vector<8x128xf32>
    %33 = tpu.matmul %30, %0, %cst_11 {dimension_numbers = #tpu.dot_dimension_numbers<[1], [0], [0], [1], [0, 0, 1, 1], [], []>} : vector<8x32xf32>, vector<32x128xf32>, vector<8x128xf32> -> vector<8x128xf32>
    %34 = arith.addf %32, %33 : vector<8x128xf32>
    %35 = arith.mulf %34, %9 : vector<8x128xf32>
    %36 = math.tanh %35 : vector<8x128xf32>
    %37 = arith.mulf %36, %9 : vector<8x128xf32>
    %38 = arith.addf %37, %11 : vector<8x128xf32>
    %39 = vector.extract_strided_slice %38 {offsets = [0, 0], sizes = [8, 32], strides = [1, 1]} : vector<8x128xf32> to vector<8x32xf32>
    %40 = vector.extract_strided_slice %38 {offsets = [0, 32], sizes = [8, 32], strides = [1, 1]} : vector<8x128xf32> to vector<8x32xf32>
    %41 = vector.extract_strided_slice %38 {offsets = [0, 64], sizes = [8, 32], strides = [1, 1]} : vector<8x128xf32> to vector<8x32xf32>
    %42 = vector.extract_strided_slice %38 {offsets = [0, 96], sizes = [8, 32], strides = [1, 1]} : vector<8x128xf32> to vector<8x32xf32>
    %43 = arith.mulf %40, %28 : vector<8x32xf32>
    %44 = arith.mulf %39, %41 : vector<8x32xf32>
    %45 = arith.addf %43, %44 : vector<8x32xf32>
    %46 = math.tanh %45 : vector<8x32xf32>
    %47 = arith.mulf %42, %46 : vector<8x32xf32>
    %c2 = arith.constant 2 : index
    %c0_12 = arith.constant 0 : index
    %c0_13 = arith.constant 0 : index
    %48 = vector.load %arg1[%c2, %c0_12, %c0_13] : memref<8x8x128xf32, #tpu.memory_space<vmem>>, vector<1x8x128xf32>
    %49 = vector.shape_cast %48 : vector<1x8x128xf32> to vector<8x128xf32>
    %cst_14 = arith.constant dense<0.000000e+00> : vector<8x128xf32>
    %50 = tpu.matmul %47, %0, %cst_14 {dimension_numbers = #tpu.dot_dimension_numbers<[1], [0], [0], [1], [0, 0, 1, 1], [], []>} : vector<8x32xf32>, vector<32x128xf32>, vector<8x128xf32> -> vector<8x128xf32>
    %51 = arith.addf %49, %50 : vector<8x128xf32>
    %52 = arith.mulf %51, %9 : vector<8x128xf32>
    %53 = math.tanh %52 : vector<8x128xf32>
    %54 = arith.mulf %53, %9 : vector<8x128xf32>
    %55 = arith.addf %54, %11 : vector<8x128xf32>
    %56 = vector.extract_strided_slice %55 {offsets = [0, 0], sizes = [8, 32], strides = [1, 1]} : vector<8x128xf32> to vector<8x32xf32>
    %57 = vector.extract_strided_slice %55 {offsets = [0, 32], sizes = [8, 32], strides = [1, 1]} : vector<8x128xf32> to vector<8x32xf32>
    %58 = vector.extract_strided_slice %55 {offsets = [0, 64], sizes = [8, 32], strides = [1, 1]} : vector<8x128xf32> to vector<8x32xf32>
    %59 = vector.extract_strided_slice %55 {offsets = [0, 96], sizes = [8, 32], strides = [1, 1]} : vector<8x128xf32> to vector<8x32xf32>
    %60 = arith.mulf %57, %45 : vector<8x32xf32>
    %61 = arith.mulf %56, %58 : vector<8x32xf32>
    %62 = arith.addf %60, %61 : vector<8x32xf32>
    %63 = math.tanh %62 : vector<8x32xf32>
    %64 = arith.mulf %59, %63 : vector<8x32xf32>
    %c3 = arith.constant 3 : index
    %c0_15 = arith.constant 0 : index
    %c0_16 = arith.constant 0 : index
    %65 = vector.load %arg1[%c3, %c0_15, %c0_16] : memref<8x8x128xf32, #tpu.memory_space<vmem>>, vector<1x8x128xf32>
    %66 = vector.shape_cast %65 : vector<1x8x128xf32> to vector<8x128xf32>
    %cst_17 = arith.constant dense<0.000000e+00> : vector<8x128xf32>
    %67 = tpu.matmul %64, %0, %cst_17 {dimension_numbers = #tpu.dot_dimension_numbers<[1], [0], [0], [1], [0, 0, 1, 1], [], []>} : vector<8x32xf32>, vector<32x128xf32>, vector<8x128xf32> -> vector<8x128xf32>
    %68 = arith.addf %66, %67 : vector<8x128xf32>
    %69 = arith.mulf %68, %9 : vector<8x128xf32>
    %70 = math.tanh %69 : vector<8x128xf32>
    %71 = arith.mulf %70, %9 : vector<8x128xf32>
    %72 = arith.addf %71, %11 : vector<8x128xf32>
    %73 = vector.extract_strided_slice %72 {offsets = [0, 0], sizes = [8, 32], strides = [1, 1]} : vector<8x128xf32> to vector<8x32xf32>
    %74 = vector.extract_strided_slice %72 {offsets = [0, 32], sizes = [8, 32], strides = [1, 1]} : vector<8x128xf32> to vector<8x32xf32>
    %75 = vector.extract_strided_slice %72 {offsets = [0, 64], sizes = [8, 32], strides = [1, 1]} : vector<8x128xf32> to vector<8x32xf32>
    %76 = vector.extract_strided_slice %72 {offsets = [0, 96], sizes = [8, 32], strides = [1, 1]} : vector<8x128xf32> to vector<8x32xf32>
    %77 = arith.mulf %74, %62 : vector<8x32xf32>
    %78 = arith.mulf %73, %75 : vector<8x32xf32>
    %79 = arith.addf %77, %78 : vector<8x32xf32>
    %80 = math.tanh %79 : vector<8x32xf32>
    %81 = arith.mulf %76, %80 : vector<8x32xf32>
    %c4 = arith.constant 4 : index
    %c0_18 = arith.constant 0 : index
    %c0_19 = arith.constant 0 : index
    %82 = vector.load %arg1[%c4, %c0_18, %c0_19] : memref<8x8x128xf32, #tpu.memory_space<vmem>>, vector<1x8x128xf32>
    %83 = vector.shape_cast %82 : vector<1x8x128xf32> to vector<8x128xf32>
    %cst_20 = arith.constant dense<0.000000e+00> : vector<8x128xf32>
    %84 = tpu.matmul %81, %0, %cst_20 {dimension_numbers = #tpu.dot_dimension_numbers<[1], [0], [0], [1], [0, 0, 1, 1], [], []>} : vector<8x32xf32>, vector<32x128xf32>, vector<8x128xf32> -> vector<8x128xf32>
    %85 = arith.addf %83, %84 : vector<8x128xf32>
    %86 = arith.mulf %85, %9 : vector<8x128xf32>
    %87 = math.tanh %86 : vector<8x128xf32>
    %88 = arith.mulf %87, %9 : vector<8x128xf32>
    %89 = arith.addf %88, %11 : vector<8x128xf32>
    %90 = vector.extract_strided_slice %89 {offsets = [0, 0], sizes = [8, 32], strides = [1, 1]} : vector<8x128xf32> to vector<8x32xf32>
    %91 = vector.extract_strided_slice %89 {offsets = [0, 32], sizes = [8, 32], strides = [1, 1]} : vector<8x128xf32> to vector<8x32xf32>
    %92 = vector.extract_strided_slice %89 {offsets = [0, 64], sizes = [8, 32], strides = [1, 1]} : vector<8x128xf32> to vector<8x32xf32>
    %93 = vector.extract_strided_slice %89 {offsets = [0, 96], sizes = [8, 32], strides = [1, 1]} : vector<8x128xf32> to vector<8x32xf32>
    %94 = arith.mulf %91, %79 : vector<8x32xf32>
    %95 = arith.mulf %90, %92 : vector<8x32xf32>
    %96 = arith.addf %94, %95 : vector<8x32xf32>
    %97 = math.tanh %96 : vector<8x32xf32>
    %98 = arith.mulf %93, %97 : vector<8x32xf32>
    %c5 = arith.constant 5 : index
    %c0_21 = arith.constant 0 : index
    %c0_22 = arith.constant 0 : index
    %99 = vector.load %arg1[%c5, %c0_21, %c0_22] : memref<8x8x128xf32, #tpu.memory_space<vmem>>, vector<1x8x128xf32>
    %100 = vector.shape_cast %99 : vector<1x8x128xf32> to vector<8x128xf32>
    %cst_23 = arith.constant dense<0.000000e+00> : vector<8x128xf32>
    %101 = tpu.matmul %98, %0, %cst_23 {dimension_numbers = #tpu.dot_dimension_numbers<[1], [0], [0], [1], [0, 0, 1, 1], [], []>} : vector<8x32xf32>, vector<32x128xf32>, vector<8x128xf32> -> vector<8x128xf32>
    %102 = arith.addf %100, %101 : vector<8x128xf32>
    %103 = arith.mulf %102, %9 : vector<8x128xf32>
    %104 = math.tanh %103 : vector<8x128xf32>
    %105 = arith.mulf %104, %9 : vector<8x128xf32>
    %106 = arith.addf %105, %11 : vector<8x128xf32>
    %107 = vector.extract_strided_slice %106 {offsets = [0, 0], sizes = [8, 32], strides = [1, 1]} : vector<8x128xf32> to vector<8x32xf32>
    %108 = vector.extract_strided_slice %106 {offsets = [0, 32], sizes = [8, 32], strides = [1, 1]} : vector<8x128xf32> to vector<8x32xf32>
    %109 = vector.extract_strided_slice %106 {offsets = [0, 64], sizes = [8, 32], strides = [1, 1]} : vector<8x128xf32> to vector<8x32xf32>
    %110 = vector.extract_strided_slice %106 {offsets = [0, 96], sizes = [8, 32], strides = [1, 1]} : vector<8x128xf32> to vector<8x32xf32>
    %111 = arith.mulf %108, %96 : vector<8x32xf32>
    %112 = arith.mulf %107, %109 : vector<8x32xf32>
    %113 = arith.addf %111, %112 : vector<8x32xf32>
    %114 = math.tanh %113 : vector<8x32xf32>
    %115 = arith.mulf %110, %114 : vector<8x32xf32>
    %c6 = arith.constant 6 : index
    %c0_24 = arith.constant 0 : index
    %c0_25 = arith.constant 0 : index
    %116 = vector.load %arg1[%c6, %c0_24, %c0_25] : memref<8x8x128xf32, #tpu.memory_space<vmem>>, vector<1x8x128xf32>
    %117 = vector.shape_cast %116 : vector<1x8x128xf32> to vector<8x128xf32>
    %cst_26 = arith.constant dense<0.000000e+00> : vector<8x128xf32>
    %118 = tpu.matmul %115, %0, %cst_26 {dimension_numbers = #tpu.dot_dimension_numbers<[1], [0], [0], [1], [0, 0, 1, 1], [], []>} : vector<8x32xf32>, vector<32x128xf32>, vector<8x128xf32> -> vector<8x128xf32>
    %119 = arith.addf %117, %118 : vector<8x128xf32>
    %120 = arith.mulf %119, %9 : vector<8x128xf32>
    %121 = math.tanh %120 : vector<8x128xf32>
    %122 = arith.mulf %121, %9 : vector<8x128xf32>
    %123 = arith.addf %122, %11 : vector<8x128xf32>
    %124 = vector.extract_strided_slice %123 {offsets = [0, 0], sizes = [8, 32], strides = [1, 1]} : vector<8x128xf32> to vector<8x32xf32>
    %125 = vector.extract_strided_slice %123 {offsets = [0, 32], sizes = [8, 32], strides = [1, 1]} : vector<8x128xf32> to vector<8x32xf32>
    %126 = vector.extract_strided_slice %123 {offsets = [0, 64], sizes = [8, 32], strides = [1, 1]} : vector<8x128xf32> to vector<8x32xf32>
    %127 = vector.extract_strided_slice %123 {offsets = [0, 96], sizes = [8, 32], strides = [1, 1]} : vector<8x128xf32> to vector<8x32xf32>
    %128 = arith.mulf %125, %113 : vector<8x32xf32>
    %129 = arith.mulf %124, %126 : vector<8x32xf32>
    %130 = arith.addf %128, %129 : vector<8x32xf32>
    %131 = math.tanh %130 : vector<8x32xf32>
    %132 = arith.mulf %127, %131 : vector<8x32xf32>
    %c7 = arith.constant 7 : index
    %c0_27 = arith.constant 0 : index
    %c0_28 = arith.constant 0 : index
    %133 = vector.load %arg1[%c7, %c0_27, %c0_28] : memref<8x8x128xf32, #tpu.memory_space<vmem>>, vector<1x8x128xf32>
    %134 = vector.shape_cast %133 : vector<1x8x128xf32> to vector<8x128xf32>
    %cst_29 = arith.constant dense<0.000000e+00> : vector<8x128xf32>
    %135 = tpu.matmul %132, %0, %cst_29 {dimension_numbers = #tpu.dot_dimension_numbers<[1], [0], [0], [1], [0, 0, 1, 1], [], []>} : vector<8x32xf32>, vector<32x128xf32>, vector<8x128xf32> -> vector<8x128xf32>
    %136 = arith.addf %134, %135 : vector<8x128xf32>
    %137 = arith.mulf %136, %9 : vector<8x128xf32>
    %138 = math.tanh %137 : vector<8x128xf32>
    %139 = arith.mulf %138, %9 : vector<8x128xf32>
    %140 = arith.addf %139, %11 : vector<8x128xf32>
    %141 = vector.extract_strided_slice %140 {offsets = [0, 0], sizes = [8, 32], strides = [1, 1]} : vector<8x128xf32> to vector<8x32xf32>
    %142 = vector.extract_strided_slice %140 {offsets = [0, 32], sizes = [8, 32], strides = [1, 1]} : vector<8x128xf32> to vector<8x32xf32>
    %143 = vector.extract_strided_slice %140 {offsets = [0, 64], sizes = [8, 32], strides = [1, 1]} : vector<8x128xf32> to vector<8x32xf32>
    %144 = vector.extract_strided_slice %140 {offsets = [0, 96], sizes = [8, 32], strides = [1, 1]} : vector<8x128xf32> to vector<8x32xf32>
    %145 = arith.mulf %142, %130 : vector<8x32xf32>
    %146 = arith.mulf %141, %143 : vector<8x32xf32>
    %147 = arith.addf %145, %146 : vector<8x32xf32>
    %148 = math.tanh %147 : vector<8x32xf32>
    %149 = arith.mulf %144, %148 : vector<8x32xf32>
    %c0_30 = arith.constant 0 : index
    %c0_31 = arith.constant 0 : index
    %150 = vector.load %arg3[%c0_30, %c0_31] : memref<32x128xf32, #tpu.memory_space<vmem>>, vector<32x128xf32>
    %cst_32 = arith.constant dense<0.000000e+00> : vector<8x128xf32>
    %151 = tpu.matmul %149, %150, %cst_32 {dimension_numbers = #tpu.dot_dimension_numbers<[1], [0], [0], [1], [0, 0, 1, 1], [], []>} : vector<8x32xf32>, vector<32x128xf32>, vector<8x128xf32> -> vector<8x128xf32>
    %c0_33 = arith.constant 0 : index
    %c0_34 = arith.constant 0 : index
    %152 = vector.load %arg4[%c0_33, %c0_34] : memref<1x128xf32, #tpu.memory_space<vmem>>, vector<1x128xf32>
    %153 = vector.broadcast %152 : vector<1x128xf32> to vector<8x128xf32>
    %154 = arith.addf %151, %153 : vector<8x128xf32>
    %c0_35 = arith.constant 0 : index
    %c0_36 = arith.constant 0 : index
    %155 = vector.load %arg5[%c0_35, %c0_36] : memref<8x128xf32, #tpu.memory_space<vmem>>, vector<8x128xf32>
    tpu.vector_store %arg5[%c0_35, %c0_36], %154 {strides = array<i32>} : memref<8x128xf32, #tpu.memory_space<vmem>>, vector<8x128xf32>,
    return
  }
  func.func @transform_0(%arg0: i32) -> (i32, i32, i32) {
    %c0_i32 = arith.constant 0 : i32
    %c0_i32_0 = arith.constant 0 : i32
    %c0_i32_1 = arith.constant 0 : i32
    return %c0_i32, %arg0, %c0_i32_0 : i32, i32, i32
  }
  func.func @transform_1(%arg0: i32) -> (i32, i32) {
    %c0_i32 = arith.constant 0 : i32
    %c0_i32_0 = arith.constant 0 : i32
    %c0_i32_1 = arith.constant 0 : i32
    return %c0_i32, %c0_i32_0 : i32, i32
  }
  func.func @transform_2(%arg0: i32) -> (i32, i32) {
    %c0_i32 = arith.constant 0 : i32
    %c0_i32_0 = arith.constant 0 : i32
    %c0_i32_1 = arith.constant 0 : i32
    return %c0_i32, %c0_i32_0 : i32, i32
  }
  func.func @transform_3(%arg0: i32) -> (i32, i32) {
    %c0_i32 = arith.constant 0 : i32
    %c0_i32_0 = arith.constant 0 : i32
    %c0_i32_1 = arith.constant 0 : i32
    return %c0_i32, %c0_i32_0 : i32, i32
  }
  func.func @transform_4(%arg0: i32) -> (i32, i32) {
    %c0_i32 = arith.constant 0 : i32
    %c0_i32_0 = arith.constant 0 : i32
    return %arg0, %c0_i32 : i32, i32
  }
}

</mosaic_0001>

<llo_original>
// kernel: text_lstm_forward.1
$region0: #{text_lstm_forward.1}
  #allocation0 [shape = 'u32[]', space=smem, size = 0x4, offset = 0x4, fixed_abs, tag = 'smem constant byte address 0x4 - core index']
  #allocation1 [shape = 'u32[144,128]{1,0:T(1,128)}', space=vmem, size = 0x12000, scoped, tag = 'internal scratch']
  %s0 = inlined_call_operand.vmem [shape: f32[8,8,128], index: 0, kind: input, shape index: {}]
  %s1 = inlined_call_operand.vmem [shape: f32[32,128], index: 1, kind: input, shape index: {}]
  %s2 = inlined_call_operand.vmem [shape: f32[32,128], index: 2, kind: input, shape index: {}]
  %s3 = inlined_call_operand.vmem [shape: f32[1,128], index: 3, kind: input, shape index: {}]
  %s4 = inlined_call_operand.vmem [shape: f32[8,128], index: 4, kind: output, shape index: {}]
  %s5 = sld [smem:[#allocation0]]
  $region26: #{text_lstm_forward.1} parent=0
    _
  %s7 = ssub.s32 1, %s5
  %s8 = scalar_select 0, %s7, %s5
  // Predicated region
  $region2: #{text_lstm_forward.1} parent=0 // pred_check
    _
  $region3: #{text_lstm_forward.1} parent=0 // pred_check_branch
    %10 = sbr.rel (0) target = $region5
  $region4: #{text_lstm_forward.1} parent=0 // pred_region
    _
  $region5: #{text_lstm_forward.1} parent=0 // pred_fallthru
    _
  // Predicated region
  $region6: #{text_lstm_forward.1} parent=0 // pred_check
    _
  $region7: #{text_lstm_forward.1} parent=0 // pred_check_branch
    %12 = sbr.rel (0) target = $region9
  $region8: #{text_lstm_forward.1} parent=0 // pred_region
    _
  $region9: #{text_lstm_forward.1} parent=0 // pred_fallthru
    _
  // Predicated region
  $region10: #{text_lstm_forward.1} parent=0 // pred_check
    _
  $region11: #{text_lstm_forward.1} parent=0 // pred_check_branch
    %14 = sbr.rel (0) target = $region13
  $region12: #{text_lstm_forward.1} parent=0 // pred_region
    _
  $region13: #{text_lstm_forward.1} parent=0 // pred_fallthru
    _
  // Predicated region
  $region14: #{text_lstm_forward.1} parent=0 // pred_check
    _
  $region15: #{text_lstm_forward.1} parent=0 // pred_check_branch
    %16 = sbr.rel (0) target = $region17
  $region16: #{text_lstm_forward.1} parent=0 // pred_region
    _
  $region17: #{text_lstm_forward.1} parent=0 // pred_fallthru
    _
  %v17 = vld [vmem:[%s1] sm:$0xff]
  %v18 = vld [vmem:[%s1 + $0x8] sm:$0xff]
  %v19 = vld [vmem:[%s1 + $0x10] sm:$0xff]
  %v20 = vld [vmem:[%s1 + $0x18] sm:$0xff]
  %v21 = vlaneseq
  %v22 = vand.u32 %v21, 127
  %vm23 = vcmp.ge.s32.totalorder %v22, 64
  %vm24 = vcmp.lt.s32.totalorder %v22, 96
  %vm25 = vmand %vm23, %vm24
  %v26 = vsel %vm25, 1.0, 0.5
  %v27 = vsub.f32 1.0, %v26
  %v28 = vld [vmem:[%s0] sm:$0xff]
  %vm29 = vcmask 261120
  %v31 = vsel %vm29, 0.0, 0
  %33 = vmatprep.subr.mxu0 0.0
  %34 = vmatpush1.msra.mxu0 %v17
  %35 = vmatprep.subr.mxu0 0.0
  %36 = vmatpush1.msra.mxu0 %v18
  %37 = vmatprep.subr.mxu0 0.0
  %38 = vmatpush1.msra.mxu0 %v19
  %39 = vmatprep.subr.mxu0 0.0
  %40 = vmatpush1.msra.mxu0 %v20
  %41 = vmatprep.subr.mxu0 0.0
  %42 = vmatpush1.msra.mxu0 0.0
  %43 = vmatprep.subr.mxu0 0.0
  %44 = vmatpush1.msra.mxu0 0.0
  %45 = vmatprep.subr.mxu0 0.0
  %46 = vmatpush1.msra.mxu0 0.0
  %47 = vmatprep.subr.mxu0 0.0
  %48 = vmatpush1.msra.mxu0 0.0
  %49 = vmatprep.subr.mxu0 0.0
  %50 = vmatpush1.msra.mxu0 0.0
  %51 = vmatprep.subr.mxu0 0.0
  %52 = vmatpush1.msra.mxu0 0.0
  %53 = vmatprep.subr.mxu0 0.0
  %54 = vmatpush1.msra.mxu0 0.0
  %55 = vmatprep.subr.mxu0 0.0
  %56 = vmatpush1.msra.mxu0 0.0
  %57 = vmatprep.subr.mxu0 0.0
  %58 = vmatpush1.msra.mxu0 0.0
  %59 = vmatprep.subr.mxu0 0.0
  %60 = vmatpush1.msra.mxu0 0.0
  %61 = vmatprep.subr.mxu0 0.0
  %62 = vmatpush1.msra.mxu0 0.0
  %63 = vmatprep.subr.mxu0 0.0
  %64 = vmatpush1.msra.mxu0 0.0
  %65 = vmatprep.subr.mxu0 0.0
  %66 = vmatpush1.msra.mxu0 0.0
  %67 = vmatprep.subr.mxu0 0.0
  %68 = vmatpush1.msra.mxu0 0.0
  %69 = vmatprep.subr.mxu0 0.0
  %70 = vmatpush1.msra.mxu0 0.0
  %71 = vmatprep.subr.mxu0 0.0
  %72 = vmatpush1.msra.mxu0 0.0
  %73 = vmatprep.subr.mxu0 0.0
  %74 = vmatpush1.msra.mxu0 0.0
  %75 = vmatprep.subr.mxu0 0.0
  %76 = vmatpush1.msra.mxu0 0.0
  %77 = vmatprep.subr.mxu0 0.0
  %78 = vmatpush1.msra.mxu0 0.0
  %79 = vmatprep.subr.mxu0 0.0
  %80 = vmatpush1.msra.mxu0 0.0
  %81 = vmatprep.subr.mxu0 0.0
  %82 = vmatpush1.msra.mxu0 0.0
  %83 = vmatprep.subr.mxu0 0.0
  %84 = vmatpush1.msra.mxu0 0.0
  %85 = vmatprep.subr.mxu0 0.0
  %86 = vmatpush1.msra.mxu0 0.0
  %87 = vmatprep.subr.mxu0 0.0
  %88 = vmatpush1.msra.mxu0 0.0
  %89 = vmatprep.subr.mxu0 0.0
  %90 = vmatpush1.msra.mxu0 0.0
  %91 = vmatprep.subr.mxu0 0.0
  %92 = vmatpush1.msra.mxu0 0.0
  %93 = vmatprep.subr.mxu0 0.0
  %94 = vmatpush1.msra.mxu0 0.0
  %95 = vmatprep.subr.mxu0 0.0
  %96 = vmatpush1.msra.mxu0 0.0
  %97 = vmatprep.mubr.f32.mxu0 0.0
  %98 = vmatmul.mubr.f32.gmra.mrb[0].mxu0 %v31
  %v99 = vpop.f32.mrb[0].mxu0
  %v100 = vadd.f32 0.0, %v99
  %v101 = vpop.f32.mrb[0].mxu0
  %102 = vdwg.mxu0
  %v103 = vadd.f32 %v28, %v100
  %v104 = vmul.f32 %v103, %v26
  %v105 = vtanh.pop %v104
  %v106 = vmul.f32 %v105, %v26
  %v107 = vadd.f32 %v106, %v27
  %v108 = vmul.f32 %v107, 0.0
  %110 = vrot.lane.b32.xlu0 %v107, 64
  %v111 = vpop.permute.xlu0 %110
  %v113 = vmul.f32 %v107, %v111
  %115 = vrot.lane.b32.xlu0 %v113, 32
  %v116 = vpop.permute.xlu0 %115
  %v118 = vadd.f32 %v108, %v116
  %v119 = vtanh.pop %v118
  %121 = vrot.lane.b32.xlu0 %v119, 64
  %v122 = vpop.permute.xlu0 %121
  %v124 = vmul.f32 %v107, %v122
  %s125 = scalar_lea.vmem %s0, 8
  %v126 = vld [vmem:[%s125] sm:$0xff]
  %128 = vrot.lane.b32.xlu0 %v124, 32
  %v129 = vpop.permute.xlu0 %128
  %v130 = vsel %vm29, %v129, 0
  %132 = vmatprep.subr.mxu0 0.0
  %133 = vmatpush1.msra.mxu0 %v17
  %134 = vmatprep.subr.mxu0 0.0
  %135 = vmatpush1.msra.mxu0 %v18
  %136 = vmatprep.subr.mxu0 0.0
  %137 = vmatpush1.msra.mxu0 %v19
  %138 = vmatprep.subr.mxu0 0.0
  %139 = vmatpush1.msra.mxu0 %v20
  %140 = vmatprep.subr.mxu0 0.0
  %141 = vmatpush1.msra.mxu0 0.0
  %142 = vmatprep.subr.mxu0 0.0
  %143 = vmatpush1.msra.mxu0 0.0
  %144 = vmatprep.subr.mxu0 0.0
  %145 = vmatpush1.msra.mxu0 0.0
  %146 = vmatprep.subr.mxu0 0.0
  %147 = vmatpush1.msra.mxu0 0.0
  %148 = vmatprep.subr.mxu0 0.0
  %149 = vmatpush1.msra.mxu0 0.0
  %150 = vmatprep.subr.mxu0 0.0
  %151 = vmatpush1.msra.mxu0 0.0
  %152 = vmatprep.subr.mxu0 0.0
  %153 = vmatpush1.msra.mxu0 0.0
  %154 = vmatprep.subr.mxu0 0.0
  %155 = vmatpush1.msra.mxu0 0.0
  %156 = vmatprep.subr.mxu0 0.0
  %157 = vmatpush1.msra.mxu0 0.0
  %158 = vmatprep.subr.mxu0 0.0
  %159 = vmatpush1.msra.mxu0 0.0
  %160 = vmatprep.subr.mxu0 0.0
  %161 = vmatpush1.msra.mxu0 0.0
  %162 = vmatprep.subr.mxu0 0.0
  %163 = vmatpush1.msra.mxu0 0.0
  %164 = vmatprep.subr.mxu0 0.0
  %165 = vmatpush1.msra.mxu0 0.0
  %166 = vmatprep.subr.mxu0 0.0
  %167 = vmatpush1.msra.mxu0 0.0
  %168 = vmatprep.subr.mxu0 0.0
  %169 = vmatpush1.msra.mxu0 0.0
  %170 = vmatprep.subr.mxu0 0.0
  %171 = vmatpush1.msra.mxu0 0.0
  %172 = vmatprep.subr.mxu0 0.0
  %173 = vmatpush1.msra.mxu0 0.0
  %174 = vmatprep.subr.mxu0 0.0
  %175 = vmatpush1.msra.mxu0 0.0
  %176 = vmatprep.subr.mxu0 0.0
  %177 = vmatpush1.msra.mxu0 0.0
  %178 = vmatprep.subr.mxu0 0.0
  %179 = vmatpush1.msra.mxu0 0.0
  %180 = vmatprep.subr.mxu0 0.0
  %181 = vmatpush1.msra.mxu0 0.0
  %182 = vmatprep.subr.mxu0 0.0
  %183 = vmatpush1.msra.mxu0 0.0
  %184 = vmatprep.subr.mxu0 0.0
  %185 = vmatpush1.msra.mxu0 0.0
  %186 = vmatprep.subr.mxu0 0.0
  %187 = vmatpush1.msra.mxu0 0.0
  %188 = vmatprep.subr.mxu0 0.0
  %189 = vmatpush1.msra.mxu0 0.0
  %190 = vmatprep.subr.mxu0 0.0
  %191 = vmatpush1.msra.mxu0 0.0
  %192 = vmatprep.subr.mxu0 0.0
  %193 = vmatpush1.msra.mxu0 0.0
  %194 = vmatprep.subr.mxu0 0.0
  %195 = vmatpush1.msra.mxu0 0.0
  %196 = vmatprep.mubr.f32.mxu0 0.0
  %197 = vmatmul.mubr.f32.gmra.mrb[0].mxu0 %v130
  %v198 = vpop.f32.mrb[0].mxu0
  %v199 = vadd.f32 0.0, %v198
  %v200 = vpop.f32.mrb[0].mxu0
  %201 = vdwg.mxu0
  %v202 = vadd.f32 %v126, %v199
  %v203 = vmul.f32 %v202, %v26
  %v204 = vtanh.pop %v203
  %v205 = vmul.f32 %v204, %v26
  %v206 = vadd.f32 %v205, %v27
  %v207 = vmul.f32 %v206, %v118
  %209 = vrot.lane.b32.xlu0 %v206, 64
  %v210 = vpop.permute.xlu0 %209
  %v212 = vmul.f32 %v206, %v210
  %214 = vrot.lane.b32.xlu0 %v212, 32
  %v215 = vpop.permute.xlu0 %214
  %v217 = vadd.f32 %v207, %v215
  %v218 = vtanh.pop %v217
  %220 = vrot.lane.b32.xlu0 %v218, 64
  %v221 = vpop.permute.xlu0 %220
  %v223 = vmul.f32 %v206, %v221
  %s224 = scalar_lea.vmem %s0, 16
  %v225 = vld [vmem:[%s224] sm:$0xff]
  %227 = vrot.lane.b32.xlu0 %v223, 32
  %v228 = vpop.permute.xlu0 %227
  %v229 = vsel %vm29, %v228, 0
  %231 = vmatprep.subr.mxu0 0.0
  %232 = vmatpush1.msra.mxu0 %v17
  %233 = vmatprep.subr.mxu0 0.0
  %234 = vmatpush1.msra.mxu0 %v18
  %235 = vmatprep.subr.mxu0 0.0
  %236 = vmatpush1.msra.mxu0 %v19
  %237 = vmatprep.subr.mxu0 0.0
  %238 = vmatpush1.msra.mxu0 %v20
  %239 = vmatprep.subr.mxu0 0.0
  %240 = vmatpush1.msra.mxu0 0.0
  %241 = vmatprep.subr.mxu0 0.0
  %242 = vmatpush1.msra.mxu0 0.0
  %243 = vmatprep.subr.mxu0 0.0
  %244 = vmatpush1.msra.mxu0 0.0
  %245 = vmatprep.subr.mxu0 0.0
  %246 = vmatpush1.msra.mxu0 0.0
  %247 = vmatprep.subr.mxu0 0.0
  %248 = vmatpush1.msra.mxu0 0.0
  %249 = vmatprep.subr.mxu0 0.0
  %250 = vmatpush1.msra.mxu0 0.0
  %251 = vmatprep.subr.mxu0 0.0
  %252 = vmatpush1.msra.mxu0 0.0
  %253 = vmatprep.subr.mxu0 0.0
  %254 = vmatpush1.msra.mxu0 0.0
  %255 = vmatprep.subr.mxu0 0.0
  %256 = vmatpush1.msra.mxu0 0.0
  %257 = vmatprep.subr.mxu0 0.0
  %258 = vmatpush1.msra.mxu0 0.0
  %259 = vmatprep.subr.mxu0 0.0
  %260 = vmatpush1.msra.mxu0 0.0
  %261 = vmatprep.subr.mxu0 0.0
  %262 = vmatpush1.msra.mxu0 0.0
  %263 = vmatprep.subr.mxu0 0.0
  %264 = vmatpush1.msra.mxu0 0.0
  %265 = vmatprep.subr.mxu0 0.0
  %266 = vmatpush1.msra.mxu0 0.0
  %267 = vmatprep.subr.mxu0 0.0
  %268 = vmatpush1.msra.mxu0 0.0
  %269 = vmatprep.subr.mxu0 0.0
  %270 = vmatpush1.msra.mxu0 0.0
  %271 = vmatprep.subr.mxu0 0.0
  %272 = vmatpush1.msra.mxu0 0.0
  %273 = vmatprep.subr.mxu0 0.0
  %274 = vmatpush1.msra.mxu0 0.0
  %275 = vmatprep.subr.mxu0 0.0
  %276 = vmatpush1.msra.mxu0 0.0
  %277 = vmatprep.subr.mxu0 0.0
  %278 = vmatpush1.msra.mxu0 0.0
  %279 = vmatprep.subr.mxu0 0.0
  %280 = vmatpush1.msra.mxu0 0.0
  %281 = vmatprep.subr.mxu0 0.0
  %282 = vmatpush1.msra.mxu0 0.0
  %283 = vmatprep.subr.mxu0 0.0
  %284 = vmatpush1.msra.mxu0 0.0
  %285 = vmatprep.subr.mxu0 0.0
  %286 = vmatpush1.msra.mxu0 0.0
  %287 = vmatprep.subr.mxu0 0.0
  %288 = vmatpush1.msra.mxu0 0.0
  %289 = vmatprep.subr.mxu0 0.0
  %290 = vmatpush1.msra.mxu0 0.0
  %291 = vmatprep.subr.mxu0 0.0
  %292 = vmatpush1.msra.mxu0 0.0
  %293 = vmatprep.subr.mxu0 0.0
  %294 = vmatpush1.msra.mxu0 0.0
  %295 = vmatprep.mubr.f32.mxu0 0.0
  %296 = vmatmul.mubr.f32.gmra.mrb[0].mxu0 %v229
  %v297 = vpop.f32.mrb[0].mxu0
  %v298 = vadd.f32 0.0, %v297
  %v299 = vpop.f32.mrb[0].mxu0
  %300 = vdwg.mxu0
  %v301 = vadd.f32 %v225, %v298
  %v302 = vmul.f32 %v301, %v26
  %v303 = vtanh.pop %v302
  %v304 = vmul.f32 %v303, %v26
  %v305 = vadd.f32 %v304, %v27
  %v306 = vmul.f32 %v305, %v217
  %308 = vrot.lane.b32.xlu0 %v305, 64
  %v309 = vpop.permute.xlu0 %308
  %v311 = vmul.f32 %v305, %v309
  %313 = vrot.lane.b32.xlu0 %v311, 32
  %v314 = vpop.permute.xlu0 %313
  %v316 = vadd.f32 %v306, %v314
  %v317 = vtanh.pop %v316
  %319 = vrot.lane.b32.xlu0 %v317, 64
  %v320 = vpop.permute.xlu0 %319
  %v322 = vmul.f32 %v305, %v320
  %s323 = scalar_lea.vmem %s0, 24
  %v324 = vld [vmem:[%s323] sm:$0xff]
  %326 = vrot.lane.b32.xlu0 %v322, 32
  %v327 = vpop.permute.xlu0 %326
  %v328 = vsel %vm29, %v327, 0
  %330 = vmatprep.subr.mxu0 0.0
  %331 = vmatpush1.msra.mxu0 %v17
  %332 = vmatprep.subr.mxu0 0.0
  %333 = vmatpush1.msra.mxu0 %v18
  %334 = vmatprep.subr.mxu0 0.0
  %335 = vmatpush1.msra.mxu0 %v19
  %336 = vmatprep.subr.mxu0 0.0
  %337 = vmatpush1.msra.mxu0 %v20
  %338 = vmatprep.subr.mxu0 0.0
  %339 = vmatpush1.msra.mxu0 0.0
  %340 = vmatprep.subr.mxu0 0.0
  %341 = vmatpush1.msra.mxu0 0.0
  %342 = vmatprep.subr.mxu0 0.0
  %343 = vmatpush1.msra.mxu0 0.0
  %344 = vmatprep.subr.mxu0 0.0
  %345 = vmatpush1.msra.mxu0 0.0
  %346 = vmatprep.subr.mxu0 0.0
  %347 = vmatpush1.msra.mxu0 0.0
  %348 = vmatprep.subr.mxu0 0.0
  %349 = vmatpush1.msra.mxu0 0.0
  %350 = vmatprep.subr.mxu0 0.0
  %351 = vmatpush1.msra.mxu0 0.0
  %352 = vmatprep.subr.mxu0 0.0
  %353 = vmatpush1.msra.mxu0 0.0
  %354 = vmatprep.subr.mxu0 0.0
  %355 = vmatpush1.msra.mxu0 0.0
  %356 = vmatprep.subr.mxu0 0.0
  %357 = vmatpush1.msra.mxu0 0.0
  %358 = vmatprep.subr.mxu0 0.0
  %359 = vmatpush1.msra.mxu0 0.0
  %360 = vmatprep.subr.mxu0 0.0
  %361 = vmatpush1.msra.mxu0 0.0
  %362 = vmatprep.subr.mxu0 0.0
  %363 = vmatpush1.msra.mxu0 0.0
  %364 = vmatprep.subr.mxu0 0.0
  %365 = vmatpush1.msra.mxu0 0.0
  %366 = vmatprep.subr.mxu0 0.0
  %367 = vmatpush1.msra.mxu0 0.0
  %368 = vmatprep.subr.mxu0 0.0
  %369 = vmatpush1.msra.mxu0 0.0
  %370 = vmatprep.subr.mxu0 0.0
  %371 = vmatpush1.msra.mxu0 0.0
  %372 = vmatprep.subr.mxu0 0.0
  %373 = vmatpush1.msra.mxu0 0.0
  %374 = vmatprep.subr.mxu0 0.0
  %375 = vmatpush1.msra.mxu0 0.0
  %376 = vmatprep.subr.mxu0 0.0
  %377 = vmatpush1.msra.mxu0 0.0
  %378 = vmatprep.subr.mxu0 0.0
  %379 = vmatpush1.msra.mxu0 0.0
  %380 = vmatprep.subr.mxu0 0.0
  %381 = vmatpush1.msra.mxu0 0.0
  %382 = vmatprep.subr.mxu0 0.0
  %383 = vmatpush1.msra.mxu0 0.0
  %384 = vmatprep.subr.mxu0 0.0
  %385 = vmatpush1.msra.mxu0 0.0
  %386 = vmatprep.subr.mxu0 0.0
  %387 = vmatpush1.msra.mxu0 0.0
  %388 = vmatprep.subr.mxu0 0.0
  %389 = vmatpush1.msra.mxu0 0.0
  %390 = vmatprep.subr.mxu0 0.0
  %391 = vmatpush1.msra.mxu0 0.0
  %392 = vmatprep.subr.mxu0 0.0
  %393 = vmatpush1.msra.mxu0 0.0
  %394 = vmatprep.mubr.f32.mxu0 0.0
  %395 = vmatmul.mubr.f32.gmra.mrb[0].mxu0 %v328
  %v396 = vpop.f32.mrb[0].mxu0
  %v397 = vadd.f32 0.0, %v396
  %v398 = vpop.f32.mrb[0].mxu0
  %399 = vdwg.mxu0
  %v400 = vadd.f32 %v324, %v397
  %v401 = vmul.f32 %v400, %v26
  %v402 = vtanh.pop %v401
  %v403 = vmul.f32 %v402, %v26
  %v404 = vadd.f32 %v403, %v27
  %v405 = vmul.f32 %v404, %v316
  %407 = vrot.lane.b32.xlu0 %v404, 64
  %v408 = vpop.permute.xlu0 %407
  %v410 = vmul.f32 %v404, %v408
  %412 = vrot.lane.b32.xlu0 %v410, 32
  %v413 = vpop.permute.xlu0 %412
  %v415 = vadd.f32 %v405, %v413
  %v416 = vtanh.pop %v415
  %418 = vrot.lane.b32.xlu0 %v416, 64
  %v419 = vpop.permute.xlu0 %418
  %v421 = vmul.f32 %v404, %v419
  %s422 = scalar_lea.vmem %s0, 32
  %v423 = vld [vmem:[%s422] sm:$0xff]
  %425 = vrot.lane.b32.xlu0 %v421, 32
  %v426 = vpop.permute.xlu0 %425
  %v427 = vsel %vm29, %v426, 0
  %429 = vmatprep.subr.mxu0 0.0
  %430 = vmatpush1.msra.mxu0 %v17
  %431 = vmatprep.subr.mxu0 0.0
  %432 = vmatpush1.msra.mxu0 %v18
  %433 = vmatprep.subr.mxu0 0.0
  %434 = vmatpush1.msra.mxu0 %v19
  %435 = vmatprep.subr.mxu0 0.0
  %436 = vmatpush1.msra.mxu0 %v20
  %437 = vmatprep.subr.mxu0 0.0
  %438 = vmatpush1.msra.mxu0 0.0
  %439 = vmatprep.subr.mxu0 0.0
  %440 = vmatpush1.msra.mxu0 0.0
  %441 = vmatprep.subr.mxu0 0.0
  %442 = vmatpush1.msra.mxu0 0.0
  %443 = vmatprep.subr.mxu0 0.0
  %444 = vmatpush1.msra.mxu0 0.0
  %445 = vmatprep.subr.mxu0 0.0
  %446 = vmatpush1.msra.mxu0 0.0
  %447 = vmatprep.subr.mxu0 0.0
  %448 = vmatpush1.msra.mxu0 0.0
  %449 = vmatprep.subr.mxu0 0.0
  %450 = vmatpush1.msra.mxu0 0.0
  %451 = vmatprep.subr.mxu0 0.0
  %452 = vmatpush1.msra.mxu0 0.0
  %453 = vmatprep.subr.mxu0 0.0
  %454 = vmatpush1.msra.mxu0 0.0
  %455 = vmatprep.subr.mxu0 0.0
  %456 = vmatpush1.msra.mxu0 0.0
  %457 = vmatprep.subr.mxu0 0.0
  %458 = vmatpush1.msra.mxu0 0.0
  %459 = vmatprep.subr.mxu0 0.0
  %460 = vmatpush1.msra.mxu0 0.0
  %461 = vmatprep.subr.mxu0 0.0
  %462 = vmatpush1.msra.mxu0 0.0
  %463 = vmatprep.subr.mxu0 0.0
  %464 = vmatpush1.msra.mxu0 0.0
  %465 = vmatprep.subr.mxu0 0.0
  %466 = vmatpush1.msra.mxu0 0.0
  %467 = vmatprep.subr.mxu0 0.0
  %468 = vmatpush1.msra.mxu0 0.0
  %469 = vmatprep.subr.mxu0 0.0
  %470 = vmatpush1.msra.mxu0 0.0
  %471 = vmatprep.subr.mxu0 0.0
  %472 = vmatpush1.msra.mxu0 0.0
  %473 = vmatprep.subr.mxu0 0.0
  %474 = vmatpush1.msra.mxu0 0.0
  %475 = vmatprep.subr.mxu0 0.0
  %476 = vmatpush1.msra.mxu0 0.0
  %477 = vmatprep.subr.mxu0 0.0
  %478 = vmatpush1.msra.mxu0 0.0
  %479 = vmatprep.subr.mxu0 0.0
  %480 = vmatpush1.msra.mxu0 0.0
  %481 = vmatprep.subr.mxu0 0.0
  %482 = vmatpush1.msra.mxu0 0.0
  %483 = vmatprep.subr.mxu0 0.0
  %484 = vmatpush1.msra.mxu0 0.0
  %485 = vmatprep.subr.mxu0 0.0
  %486 = vmatpush1.msra.mxu0 0.0
  %487 = vmatprep.subr.mxu0 0.0
  %488 = vmatpush1.msra.mxu0 0.0
  %489 = vmatprep.subr.mxu0 0.0
  %490 = vmatpush1.msra.mxu0 0.0
  %491 = vmatprep.subr.mxu0 0.0
  %492 = vmatpush1.msra.mxu0 0.0
  %493 = vmatprep.mubr.f32.mxu0 0.0
  %494 = vmatmul.mubr.f32.gmra.mrb[0].mxu0 %v427
  %v495 = vpop.f32.mrb[0].mxu0
  %v496 = vadd.f32 0.0, %v495
  %v497 = vpop.f32.mrb[0].mxu0
  %498 = vdwg.mxu0
  %v499 = vadd.f32 %v423, %v496
  %v500 = vmul.f32 %v499, %v26
  %v501 = vtanh.pop %v500
  %v502 = vmul.f32 %v501, %v26
  %v503 = vadd.f32 %v502, %v27
  %v504 = vmul.f32 %v503, %v415
  %506 = vrot.lane.b32.xlu0 %v503, 64
  %v507 = vpop.permute.xlu0 %506
  %v509 = vmul.f32 %v503, %v507
  %511 = vrot.lane.b32.xlu0 %v509, 32
  %v512 = vpop.permute.xlu0 %511
  %v514 = vadd.f32 %v504, %v512
  %v515 = vtanh.pop %v514
  %517 = vrot.lane.b32.xlu0 %v515, 64
  %v518 = vpop.permute.xlu0 %517
  %v520 = vmul.f32 %v503, %v518
  %s521 = scalar_lea.vmem %s0, 40
  %v522 = vld [vmem:[%s521] sm:$0xff]
  %524 = vrot.lane.b32.xlu0 %v520, 32
  %v525 = vpop.permute.xlu0 %524
  %v526 = vsel %vm29, %v525, 0
  %528 = vmatprep.subr.mxu0 0.0
  %529 = vmatpush1.msra.mxu0 %v17
  %530 = vmatprep.subr.mxu0 0.0
  %531 = vmatpush1.msra.mxu0 %v18
  %532 = vmatprep.subr.mxu0 0.0
  %533 = vmatpush1.msra.mxu0 %v19
  %534 = vmatprep.subr.mxu0 0.0
  %535 = vmatpush1.msra.mxu0 %v20
  %536 = vmatprep.subr.mxu0 0.0
  %537 = vmatpush1.msra.mxu0 0.0
  %538 = vmatprep.subr.mxu0 0.0
  %539 = vmatpush1.msra.mxu0 0.0
  %540 = vmatprep.subr.mxu0 0.0
  %541 = vmatpush1.msra.mxu0 0.0
  %542 = vmatprep.subr.mxu0 0.0
  %543 = vmatpush1.msra.mxu0 0.0
  %544 = vmatprep.subr.mxu0 0.0
  %545 = vmatpush1.msra.mxu0 0.0
  %546 = vmatprep.subr.mxu0 0.0
  %547 = vmatpush1.msra.mxu0 0.0
  %548 = vmatprep.subr.mxu0 0.0
  %549 = vmatpush1.msra.mxu0 0.0
  %550 = vmatprep.subr.mxu0 0.0
  %551 = vmatpush1.msra.mxu0 0.0
  %552 = vmatprep.subr.mxu0 0.0
  %553 = vmatpush1.msra.mxu0 0.0
  %554 = vmatprep.subr.mxu0 0.0
  %555 = vmatpush1.msra.mxu0 0.0
  %556 = vmatprep.subr.mxu0 0.0
  %557 = vmatpush1.msra.mxu0 0.0
  %558 = vmatprep.subr.mxu0 0.0
  %559 = vmatpush1.msra.mxu0 0.0
  %560 = vmatprep.subr.mxu0 0.0
  %561 = vmatpush1.msra.mxu0 0.0
  %562 = vmatprep.subr.mxu0 0.0
  %563 = vmatpush1.msra.mxu0 0.0
  %564 = vmatprep.subr.mxu0 0.0
  %565 = vmatpush1.msra.mxu0 0.0
  %566 = vmatprep.subr.mxu0 0.0
  %567 = vmatpush1.msra.mxu0 0.0
  %568 = vmatprep.subr.mxu0 0.0
  %569 = vmatpush1.msra.mxu0 0.0
  %570 = vmatprep.subr.mxu0 0.0
  %571 = vmatpush1.msra.mxu0 0.0
  %572 = vmatprep.subr.mxu0 0.0
  %573 = vmatpush1.msra.mxu0 0.0
  %574 = vmatprep.subr.mxu0 0.0
  %575 = vmatpush1.msra.mxu0 0.0
  %576 = vmatprep.subr.mxu0 0.0
  %577 = vmatpush1.msra.mxu0 0.0
  %578 = vmatprep.subr.mxu0 0.0
  %579 = vmatpush1.msra.mxu0 0.0
  %580 = vmatprep.subr.mxu0 0.0
  %581 = vmatpush1.msra.mxu0 0.0
  %582 = vmatprep.subr.mxu0 0.0
  %583 = vmatpush1.msra.mxu0 0.0
  %584 = vmatprep.subr.mxu0 0.0
  %585 = vmatpush1.msra.mxu0 0.0
  %586 = vmatprep.subr.mxu0 0.0
  %587 = vmatpush1.msra.mxu0 0.0
  %588 = vmatprep.subr.mxu0 0.0
  %589 = vmatpush1.msra.mxu0 0.0
  %590 = vmatprep.subr.mxu0 0.0
  %591 = vmatpush1.msra.mxu0 0.0
  %592 = vmatprep.mubr.f32.mxu0 0.0
  %593 = vmatmul.mubr.f32.gmra.mrb[0].mxu0 %v526
  %v594 = vpop.f32.mrb[0].mxu0
  %v595 = vadd.f32 0.0, %v594
  %v596 = vpop.f32.mrb[0].mxu0
  %597 = vdwg.mxu0
  %v598 = vadd.f32 %v522, %v595
  %v599 = vmul.f32 %v598, %v26
  %v600 = vtanh.pop %v599
  %v601 = vmul.f32 %v600, %v26
  %v602 = vadd.f32 %v601, %v27
  %v603 = vmul.f32 %v602, %v514
  %605 = vrot.lane.b32.xlu0 %v602, 64
  %v606 = vpop.permute.xlu0 %605
  %v608 = vmul.f32 %v602, %v606
  %610 = vrot.lane.b32.xlu0 %v608, 32
  %v611 = vpop.permute.xlu0 %610
  %v613 = vadd.f32 %v603, %v611
  %v614 = vtanh.pop %v613
  %616 = vrot.lane.b32.xlu0 %v614, 64
  %v617 = vpop.permute.xlu0 %616
  %v619 = vmul.f32 %v602, %v617
  %s620 = scalar_lea.vmem %s0, 48
  %v621 = vld [vmem:[%s620] sm:$0xff]
  %623 = vrot.lane.b32.xlu0 %v619, 32
  %v624 = vpop.permute.xlu0 %623
  %v625 = vsel %vm29, %v624, 0
  %627 = vmatprep.subr.mxu0 0.0
  %628 = vmatpush1.msra.mxu0 %v17
  %629 = vmatprep.subr.mxu0 0.0
  %630 = vmatpush1.msra.mxu0 %v18
  %631 = vmatprep.subr.mxu0 0.0
  %632 = vmatpush1.msra.mxu0 %v19
  %633 = vmatprep.subr.mxu0 0.0
  %634 = vmatpush1.msra.mxu0 %v20
  %635 = vmatprep.subr.mxu0 0.0
  %636 = vmatpush1.msra.mxu0 0.0
  %637 = vmatprep.subr.mxu0 0.0
  %638 = vmatpush1.msra.mxu0 0.0
  %639 = vmatprep.subr.mxu0 0.0
  %640 = vmatpush1.msra.mxu0 0.0
  %641 = vmatprep.subr.mxu0 0.0
  %642 = vmatpush1.msra.mxu0 0.0
  %643 = vmatprep.subr.mxu0 0.0
  %644 = vmatpush1.msra.mxu0 0.0
  %645 = vmatprep.subr.mxu0 0.0
  %646 = vmatpush1.msra.mxu0 0.0
  %647 = vmatprep.subr.mxu0 0.0
  %648 = vmatpush1.msra.mxu0 0.0
  %649 = vmatprep.subr.mxu0 0.0
  %650 = vmatpush1.msra.mxu0 0.0
  %651 = vmatprep.subr.mxu0 0.0
  %652 = vmatpush1.msra.mxu0 0.0
  %653 = vmatprep.subr.mxu0 0.0
  %654 = vmatpush1.msra.mxu0 0.0
  %655 = vmatprep.subr.mxu0 0.0
  %656 = vmatpush1.msra.mxu0 0.0
  %657 = vmatprep.subr.mxu0 0.0
  %658 = vmatpush1.msra.mxu0 0.0
  %659 = vmatprep.subr.mxu0 0.0
  %660 = vmatpush1.msra.mxu0 0.0
  %661 = vmatprep.subr.mxu0 0.0
  %662 = vmatpush1.msra.mxu0 0.0
  %663 = vmatprep.subr.mxu0 0.0
  %664 = vmatpush1.msra.mxu0 0.0
  %665 = vmatprep.subr.mxu0 0.0
  %666 = vmatpush1.msra.mxu0 0.0
  %667 = vmatprep.subr.mxu0 0.0
  %668 = vmatpush1.msra.mxu0 0.0
  %669 = vmatprep.subr.mxu0 0.0
  %670 = vmatpush1.msra.mxu0 0.0
  %671 = vmatprep.subr.mxu0 0.0
  %672 = vmatpush1.msra.mxu0 0.0
  %673 = vmatprep.subr.mxu0 0.0
  %674 = vmatpush1.msra.mxu0 0.0
  %675 = vmatprep.subr.mxu0 0.0
  %676 = vmatpush1.msra.mxu0 0.0
  %677 = vmatprep.subr.mxu0 0.0
  %678 = vmatpush1.msra.mxu0 0.0
  %679 = vmatprep.subr.mxu0 0.0
  %680 = vmatpush1.msra.mxu0 0.0
  %681 = vmatprep.subr.mxu0 0.0
  %682 = vmatpush1.msra.mxu0 0.0
  %683 = vmatprep.subr.mxu0 0.0
  %684 = vmatpush1.msra.mxu0 0.0
  %685 = vmatprep.subr.mxu0 0.0
  %686 = vmatpush1.msra.mxu0 0.0
  %687 = vmatprep.subr.mxu0 0.0
  %688 = vmatpush1.msra.mxu0 0.0
  %689 = vmatprep.subr.mxu0 0.0
  %690 = vmatpush1.msra.mxu0 0.0
  %691 = vmatprep.mubr.f32.mxu0 0.0
  %692 = vmatmul.mubr.f32.gmra.mrb[0].mxu0 %v625
  %v693 = vpop.f32.mrb[0].mxu0
  %v694 = vadd.f32 0.0, %v693
  %v695 = vpop.f32.mrb[0].mxu0
  %696 = vdwg.mxu0
  %v697 = vadd.f32 %v621, %v694
  %v698 = vmul.f32 %v697, %v26
  %v699 = vtanh.pop %v698
  %v700 = vmul.f32 %v699, %v26
  %v701 = vadd.f32 %v700, %v27
  %v702 = vmul.f32 %v701, %v613
  %704 = vrot.lane.b32.xlu0 %v701, 64
  %v705 = vpop.permute.xlu0 %704
  %v707 = vmul.f32 %v701, %v705
  %709 = vrot.lane.b32.xlu0 %v707, 32
  %v710 = vpop.permute.xlu0 %709
  %v712 = vadd.f32 %v702, %v710
  %v713 = vtanh.pop %v712
  %715 = vrot.lane.b32.xlu0 %v713, 64
  %v716 = vpop.permute.xlu0 %715
  %v718 = vmul.f32 %v701, %v716
  %s719 = scalar_lea.vmem %s0, 56
  %v720 = vld [vmem:[%s719] sm:$0xff]
  %722 = vrot.lane.b32.xlu0 %v718, 32
  %v723 = vpop.permute.xlu0 %722
  %v724 = vsel %vm29, %v723, 0
  %726 = vmatprep.subr.mxu0 0.0
  %727 = vmatpush1.msra.mxu0 %v17
  %728 = vmatprep.subr.mxu0 0.0
  %729 = vmatpush1.msra.mxu0 %v18
  %730 = vmatprep.subr.mxu0 0.0
  %731 = vmatpush1.msra.mxu0 %v19
  %732 = vmatprep.subr.mxu0 0.0
  %733 = vmatpush1.msra.mxu0 %v20
  %734 = vmatprep.subr.mxu0 0.0
  %735 = vmatpush1.msra.mxu0 0.0
  %736 = vmatprep.subr.mxu0 0.0
  %737 = vmatpush1.msra.mxu0 0.0
  %738 = vmatprep.subr.mxu0 0.0
  %739 = vmatpush1.msra.mxu0 0.0
  %740 = vmatprep.subr.mxu0 0.0
  %741 = vmatpush1.msra.mxu0 0.0
  %742 = vmatprep.subr.mxu0 0.0
  %743 = vmatpush1.msra.mxu0 0.0
  %744 = vmatprep.subr.mxu0 0.0
  %745 = vmatpush1.msra.mxu0 0.0
  %746 = vmatprep.subr.mxu0 0.0
  %747 = vmatpush1.msra.mxu0 0.0
  %748 = vmatprep.subr.mxu0 0.0
  %749 = vmatpush1.msra.mxu0 0.0
  %750 = vmatprep.subr.mxu0 0.0
  %751 = vmatpush1.msra.mxu0 0.0
  %752 = vmatprep.subr.mxu0 0.0
  %753 = vmatpush1.msra.mxu0 0.0
  %754 = vmatprep.subr.mxu0 0.0
  %755 = vmatpush1.msra.mxu0 0.0
  %756 = vmatprep.subr.mxu0 0.0
  %757 = vmatpush1.msra.mxu0 0.0
  %758 = vmatprep.subr.mxu0 0.0
  %759 = vmatpush1.msra.mxu0 0.0
  %760 = vmatprep.subr.mxu0 0.0
  %761 = vmatpush1.msra.mxu0 0.0
  %762 = vmatprep.subr.mxu0 0.0
  %763 = vmatpush1.msra.mxu0 0.0
  %764 = vmatprep.subr.mxu0 0.0
  %765 = vmatpush1.msra.mxu0 0.0
  %766 = vmatprep.subr.mxu0 0.0
  %767 = vmatpush1.msra.mxu0 0.0
  %768 = vmatprep.subr.mxu0 0.0
  %769 = vmatpush1.msra.mxu0 0.0
  %770 = vmatprep.subr.mxu0 0.0
  %771 = vmatpush1.msra.mxu0 0.0
  %772 = vmatprep.subr.mxu0 0.0
  %773 = vmatpush1.msra.mxu0 0.0
  %774 = vmatprep.subr.mxu0 0.0
  %775 = vmatpush1.msra.mxu0 0.0
  %776 = vmatprep.subr.mxu0 0.0
  %777 = vmatpush1.msra.mxu0 0.0
  %778 = vmatprep.subr.mxu0 0.0
  %779 = vmatpush1.msra.mxu0 0.0
  %780 = vmatprep.subr.mxu0 0.0
  %781 = vmatpush1.msra.mxu0 0.0
  %782 = vmatprep.subr.mxu0 0.0
  %783 = vmatpush1.msra.mxu0 0.0
  %784 = vmatprep.subr.mxu0 0.0
  %785 = vmatpush1.msra.mxu0 0.0
  %786 = vmatprep.subr.mxu0 0.0
  %787 = vmatpush1.msra.mxu0 0.0
  %788 = vmatprep.subr.mxu0 0.0
  %789 = vmatpush1.msra.mxu0 0.0
  %790 = vmatprep.mubr.f32.mxu0 0.0
  %791 = vmatmul.mubr.f32.gmra.mrb[0].mxu0 %v724
  %v792 = vpop.f32.mrb[0].mxu0
  %v793 = vadd.f32 0.0, %v792
  %v794 = vpop.f32.mrb[0].mxu0
  %795 = vdwg.mxu0
  %v796 = vadd.f32 %v720, %v793
  %v797 = vmul.f32 %v796, %v26
  %v798 = vtanh.pop %v797
  %v799 = vmul.f32 %v798, %v26
  %v800 = vadd.f32 %v799, %v27
  %v801 = vmul.f32 %v800, %v712
  %803 = vrot.lane.b32.xlu0 %v800, 64
  %v804 = vpop.permute.xlu0 %803
  %v806 = vmul.f32 %v800, %v804
  %808 = vrot.lane.b32.xlu0 %v806, 32
  %v809 = vpop.permute.xlu0 %808
  %v811 = vadd.f32 %v801, %v809
  %v812 = vtanh.pop %v811
  %814 = vrot.lane.b32.xlu0 %v812, 64
  %v815 = vpop.permute.xlu0 %814
  %v817 = vmul.f32 %v800, %v815
  %v818 = vld [vmem:[%s2] sm:$0xff]
  %v819 = vld [vmem:[%s2 + $0x8] sm:$0xff]
  %v820 = vld [vmem:[%s2 + $0x10] sm:$0xff]
  %v821 = vld [vmem:[%s2 + $0x18] sm:$0xff]
  %v822 = vld [vmem:[%s3] sm:$0x1]
  %v824 = vlaneseq
  %v825 = vshrl.u32 %v824, 7
  %v826 = vsub.s32 0, %v825
  %v827 = vrot.slane %v822, %v826
  %830 = vrot.lane.b32.xlu0 %v817, 32
  %v831 = vpop.permute.xlu0 %830
  %v832 = vsel %vm29, %v831, 0
  %834 = vmatprep.subr.mxu0 0.0
  %835 = vmatpush1.msra.mxu0 %v818
  %836 = vmatprep.subr.mxu0 0.0
  %837 = vmatpush1.msra.mxu0 %v819
  %838 = vmatprep.subr.mxu0 0.0
  %839 = vmatpush1.msra.mxu0 %v820
  %840 = vmatprep.subr.mxu0 0.0
  %841 = vmatpush1.msra.mxu0 %v821
  %842 = vmatprep.subr.mxu0 0.0
  %843 = vmatpush1.msra.mxu0 0.0
  %844 = vmatprep.subr.mxu0 0.0
  %845 = vmatpush1.msra.mxu0 0.0
  %846 = vmatprep.subr.mxu0 0.0
  %847 = vmatpush1.msra.mxu0 0.0
  %848 = vmatprep.subr.mxu0 0.0
  %849 = vmatpush1.msra.mxu0 0.0
  %850 = vmatprep.subr.mxu0 0.0
  %851 = vmatpush1.msra.mxu0 0.0
  %852 = vmatprep.subr.mxu0 0.0
  %853 = vmatpush1.msra.mxu0 0.0
  %854 = vmatprep.subr.mxu0 0.0
  %855 = vmatpush1.msra.mxu0 0.0
  %856 = vmatprep.subr.mxu0 0.0
  %857 = vmatpush1.msra.mxu0 0.0
  %858 = vmatprep.subr.mxu0 0.0
  %859 = vmatpush1.msra.mxu0 0.0
  %860 = vmatprep.subr.mxu0 0.0
  %861 = vmatpush1.msra.mxu0 0.0
  %862 = vmatprep.subr.mxu0 0.0
  %863 = vmatpush1.msra.mxu0 0.0
  %864 = vmatprep.subr.mxu0 0.0
  %865 = vmatpush1.msra.mxu0 0.0
  %866 = vmatprep.subr.mxu0 0.0
  %867 = vmatpush1.msra.mxu0 0.0
  %868 = vmatprep.subr.mxu0 0.0
  %869 = vmatpush1.msra.mxu0 0.0
  %870 = vmatprep.subr.mxu0 0.0
  %871 = vmatpush1.msra.mxu0 0.0
  %872 = vmatprep.subr.mxu0 0.0
  %873 = vmatpush1.msra.mxu0 0.0
  %874 = vmatprep.subr.mxu0 0.0
  %875 = vmatpush1.msra.mxu0 0.0
  %876 = vmatprep.subr.mxu0 0.0
  %877 = vmatpush1.msra.mxu0 0.0
  %878 = vmatprep.subr.mxu0 0.0
  %879 = vmatpush1.msra.mxu0 0.0
  %880 = vmatprep.subr.mxu0 0.0
  %881 = vmatpush1.msra.mxu0 0.0
  %882 = vmatprep.subr.mxu0 0.0
  %883 = vmatpush1.msra.mxu0 0.0
  %884 = vmatprep.subr.mxu0 0.0
  %885 = vmatpush1.msra.mxu0 0.0
  %886 = vmatprep.subr.mxu0 0.0
  %887 = vmatpush1.msra.mxu0 0.0
  %888 = vmatprep.subr.mxu0 0.0
  %889 = vmatpush1.msra.mxu0 0.0
  %890 = vmatprep.subr.mxu0 0.0
  %891 = vmatpush1.msra.mxu0 0.0
  %892 = vmatprep.subr.mxu0 0.0
  %893 = vmatpush1.msra.mxu0 0.0
  %894 = vmatprep.subr.mxu0 0.0
  %895 = vmatpush1.msra.mxu0 0.0
  %896 = vmatprep.subr.mxu0 0.0
  %897 = vmatpush1.msra.mxu0 0.0
  %898 = vmatprep.mubr.f32.mxu0 0.0
  %899 = vmatmul.mubr.f32.gmra.mrb[0].mxu0 %v832
  %v900 = vpop.f32.mrb[0].mxu0
  %v901 = vadd.f32 %v827, %v900
  %v902 = vpop.f32.mrb[0].mxu0
  %903 = vdwg.mxu0
  %904 = vst [vmem:[%s4] sm:$0xff] %v901
  // Predicated region
  $region18: #{text_lstm_forward.1} parent=0 // pred_check
    _
  $region19: #{text_lstm_forward.1} parent=0 // pred_check_branch
    %906 = sbr.rel (0) target = $region21
  $region20: #{text_lstm_forward.1} parent=0 // pred_region
    _
  $region21: #{text_lstm_forward.1} parent=0 // pred_fallthru
    _
  // Predicated region
  $region22: #{text_lstm_forward.1} parent=0 // pred_check
    _
  $region23: #{text_lstm_forward.1} parent=0 // pred_check_branch
    %908 = sbr.rel (0) target = $region25
  $region24: #{text_lstm_forward.1} parent=0 // pred_region
    _
  $region25: #{text_lstm_forward.1} parent=0 // pred_fallthru
    _

</llo_original>
